<compile_context>
chip_gen: v5e
topology: v5e:2x2
jax: 0.10.0
libtpu: 0.0.40
codegen_flags: <defaults>
</compile_context>

<pallas_src>
import math
import numpy as np
import jax
import jax.numpy as jnp
from jax import lax
from jax.experimental import pallas as pl
from jax.experimental.pallas import tpu as pltpu


def _round_up(x, m):
    return ((x + m - 1) // m) * m


def _cdiv(a, b):
    return -(-a // b)


# ----------------------------- Pallas kernel ------------------------------ #
def fsq_kernel(h_ref, w1_ref, b1s_ref, w2_ref, b2_ref,
               half_l_ref, offset_ref, half_w_ref, basis_ref,
               q_out_ref, code_ref):
    # proj, emitted transposed:  h_t[d, n] = sum_e W1[d, e] * h[n, e] + (b1+shift)[d]
    # (A @ B^T on the MXU -> result already in the lane-dense (D, tm) layout)
    h_t = lax.dot_general(
        w1_ref[...], h_ref[...],
        dimension_numbers=(((1,), (1,)), ((), ())),
        preferred_element_type=jnp.float32) + b1s_ref[...]           # (D, tm)

    # bound(z) = tanh(z + shift) * half_l - offset ; round_ste forward == round
    z = jnp.tanh(h_t) * half_l_ref[...] - offset_ref[...]            # (D, tm)
    z_round = jnp.round(z)
    quant_t = z_round / half_w_ref[...]                              # (D, tm)

    # codes_to_indexes: scale_and_shift(quant) == z_round + half_w exactly
    # (small integers, exact in f32); exact int32 accumulation, unrolled over
    # the D sublanes -> lane-dense (1, tm) code row.
    idx = (z_round + half_w_ref[...]).astype(jnp.int32)              # (D, tm)
    contrib = idx * basis_ref[...]                                    # (D, tm)
    code = contrib[0:1, :]
    for d in range(1, contrib.shape[0]):
        code = code + contrib[d:d + 1, :]
    code_ref[...] = code[None]                                        # (1, 1, tm)

    # proj_inv: q_out[n, e] = sum_d quant_t[d, n] * W2t[d, e] + b2[e]  (A^T @ B)
    q_out_ref[...] = lax.dot_general(
        quant_t, w2_ref[...],
        dimension_numbers=(((0,), (0,)), ((), ())),
        preferred_element_type=jnp.float32) + b2_ref[...]             # (tm, E)


# ------------------------------- wrapper ----------------------------------- #
def fsq_forward(h_in, proj_w, proj_b, proj_inv_w, proj_inv_b, levels,
                eps=0.001, tm=None):
    """FSQ forward.

    h_in:        [N, E] float32 (tokens flattened)
    proj_w:      [D, E] float32  (nn.Linear weight layout, out x in)
    proj_b:      [D]    float32
    proj_inv_w:  [E, D] float32  (nn.Linear weight layout, out x in)
    proj_inv_b:  [E]    float32
    Returns (q_out [N, E] float32, vq_code [N] int32).
    """
    N, E = h_in.shape
    D = proj_w.shape[0]
    assert D == len(levels)

    levels_i64 = np.asarray(levels, dtype=np.int64)
    codebook_size = int(np.prod(levels_i64))
    # vq_code is accumulated in int32 (PyTorch returns int64).
    assert codebook_size < 2 ** 31, "codebook too large for int32 vq_code"

    levels_np = np.asarray(levels, dtype=np.float64)
    half_l = (levels_np - 1.0) * (1.0 - eps) / 2.0
    offset = np.where(levels_np % 2 == 1, 0.0, 0.5)
    # np.tan(...) mirrors the given PyTorch module exactly (divide-by-zero if
    # any level == 1, same as the reference implementation).
    shift = np.tan(offset / half_l)
    half_width = levels_i64 // 2
    basis = np.concatenate(([1], np.cumprod(levels_i64[:-1])))

    def col(a, dt=jnp.float32):
        return jnp.asarray(np.asarray(a, dtype=np.float64).reshape(D, 1), dt) \
            if dt != jnp.int32 else jnp.asarray(np.asarray(a).reshape(D, 1), jnp.int32)

    half_l_a = col(half_l)
    offset_a = col(offset)
    half_w_a = col(half_width.astype(np.float64))
    basis_a = col(basis, jnp.int32)
    b1s_a = proj_b.reshape(D, 1) + jnp.asarray(shift.reshape(D, 1), jnp.float32)
    b2_a = proj_inv_b.reshape(1, E)
    w2_a = proj_inv_w.T                         # (D, E): [in, out] for the kernel

    # ---- generation-aware tile sizing ------------------------------------- #
    try:
        info = pltpu.get_tpu_info()
        vmem_cap = int(getattr(info, "vmem_capacity_bytes", 64 << 20))
    except Exception:
        vmem_cap = 64 << 20                      # conservative: v7x per-TC VMEM

    budget = min(vmem_cap // 2, 96 << 20)        # let v5e/v6e use their 128 MiB
    d_pad = _round_up(max(D, 8), 8)
    per_token = (4 * E * 2) * 2                  # double-buffered in + out tiles
    per_token += 4 * 2                           # lane-dense int32 code row
    per_token += 6 * 4 * d_pad                   # (D, tm) temporaries (transposed)
    if tm is None:
        tm = max(min(budget // per_token, 8192), 256)

    tm_eff = _round_up(max(min(tm, N), 1), 8)
    steps = _cdiv(N, tm_eff)
    if N >= 1024:
        # v7x has 2 TensorCores: keep the "parallel" axis splittable in two.
        if steps < 2:
            steps = 2
        elif steps % 2:
            steps += 1
        tm_eff = _round_up(_cdiv(N, steps), 8)
        steps = _cdiv(N, tm_eff)
    num_tiles = steps

    vmem_limit = int(min(112 << 20, max(32 << 20, (vmem_cap * 3) // 4)))

    full = lambda i: (0, 0)
    q_out, code = pl.pallas_call(
        fsq_kernel,
        out_shape=(
            jax.ShapeDtypeStruct((N, E), jnp.float32),
            jax.ShapeDtypeStruct((num_tiles, 1, tm_eff), jnp.int32),
        ),
        grid_spec=pltpu.PrefetchScalarGridSpec(
            num_scalar_prefetch=0,
            grid=(num_tiles,),
            in_specs=[
                pl.BlockSpec((tm_eff, E), lambda i: (i, 0)),   # h_in token tile
                pl.BlockSpec((D, E), full),                    # proj.weight (D, E)
                pl.BlockSpec((D, 1), full),                    # proj.bias + shift
                pl.BlockSpec((D, E), full),                    # proj_inv.weight^T
                pl.BlockSpec((1, E), full),                    # proj_inv.bias
                pl.BlockSpec((D, 1), full),                    # half_l
                pl.BlockSpec((D, 1), full),                    # offset
                pl.BlockSpec((D, 1), full),                    # half_width
                pl.BlockSpec((D, 1), full),                    # basis (int32)
            ],
            out_specs=[
                pl.BlockSpec((tm_eff, E), lambda i: (i, 0)),
                pl.BlockSpec((1, 1, tm_eff), lambda i: (i, 0, 0)),
            ],
        ),
        compiler_params=pltpu.CompilerParams(
            dimension_semantics=("parallel",),
            vmem_limit_bytes=vmem_limit),
    )(h_in, proj_w, b1s_a, w2_a, b2_a, half_l_a, offset_a, half_w_a, basis_a)

    # code is (num_tiles, 1, tm_eff); flatten and drop the (tiny) tail padding.
    return q_out, code.reshape(-1)[:N]


# ----------------------------- reference (JAX) ----------------------------- #
def fsq_reference(h_in, proj_w, proj_b, proj_inv_w, proj_inv_b, levels, eps=0.001):
    levels_np = np.asarray(levels, dtype=np.float64)
    half_l = (levels_np - 1.0) * (1.0 - eps) / 2.0
    offset = np.where(levels_np % 2 == 1, 0.0, 0.5)
    shift = np.tan(offset / half_l)
    half_width = levels_np.astype(np.int64) // 2
    basis = np.concatenate(([1], np.cumprod(levels_np[:-1].astype(np.int64))))

    h = h_in @ proj_w.T + proj_b
    z = jnp.tanh(h + jnp.asarray(shift, jnp.float32)) * jnp.asarray(half_l, jnp.float32) \
        - jnp.asarray(offset, jnp.float32)
    z_round = jnp.round(z)
    quant = z_round / jnp.asarray(half_width, jnp.float32)
    scaled = quant * jnp.asarray(half_width, jnp.float32) + jnp.asarray(half_width, jnp.float32)
    code = jnp.round(jnp.sum(scaled * jnp.asarray(basis, jnp.float32), axis=-1)).astype(jnp.int32)
    out = quant @ proj_inv_w.T + proj_inv_b
    return out, code


if __name__ == "__main__":
    # FSQ(levels=[8, 8, 8, 8], embedding_dim=32, vq_dim=4)
    levels = [8, 8, 8, 8]
    E = 32                      # embedding_dim
    D = len(levels)             # vq_dim
    N = 16                      # tokens (e.g. batch=2 x seq=8, flattened)

    key = jax.random.PRNGKey(0)
    k_h, k_w1, k_b1, k_w2, k_b2 = jax.random.split(key, 5)

    h_in = jax.random.normal(k_h, (N, E), dtype=jnp.float32)

    # Deterministic init mimicking nn.Linear (uniform +/- 1/sqrt(fan_in)),
    # weights in PyTorch (out, in) layout.
    proj_w = jax.random.uniform(k_w1, (D, E), jnp.float32,
                                minval=-1.0 / math.sqrt(E), maxval=1.0 / math.sqrt(E))
    proj_b = jax.random.uniform(k_b1, (D,), jnp.float32,
                                minval=-1.0 / math.sqrt(E), maxval=1.0 / math.sqrt(E))
    proj_inv_w = jax.random.uniform(k_w2, (E, D), jnp.float32,
                                    minval=-1.0 / math.sqrt(D), maxval=1.0 / math.sqrt(D))
    proj_inv_b = jax.random.uniform(k_b2, (E,), jnp.float32,
                                    minval=-1.0 / math.sqrt(D), maxval=1.0 / math.sqrt(D))

    q_out, vq_code = fsq_forward(h_in, proj_w, proj_b, proj_inv_w, proj_inv_b, levels)
    q_out = jax.block_until_ready(q_out)
    vq_code = jax.block_until_ready(vq_code)

    q_ref, code_ref = fsq_reference(h_in, proj_w, proj_b, proj_inv_w, proj_inv_b, levels)
    np.testing.assert_allclose(np.asarray(q_out), np.asarray(q_ref), rtol=1e-5, atol=1e-5)
    np.testing.assert_array_equal(np.asarray(vq_code), np.asarray(code_ref))

    assert q_out.shape == (N, E) and vq_code.shape == (N,)
    print("KERNEL_OK")
</pallas_src>

<mosaic_0001>
module attributes {stable_mosaic.version = 11 : i64} {
  func.func @fsq_kernel(%arg0: i32, %arg1: memref<16x32xf32, #tpu.memory_space<vmem>>, %arg2: memref<4x32xf32, #tpu.memory_space<vmem>>, %arg3: memref<4x1xf32, #tpu.memory_space<vmem>>, %arg4: memref<4x32xf32, #tpu.memory_space<vmem>>, %arg5: memref<1x32xf32, #tpu.memory_space<vmem>>, %arg6: memref<4x1xf32, #tpu.memory_space<vmem>>, %arg7: memref<4x1xf32, #tpu.memory_space<vmem>>, %arg8: memref<4x1xf32, #tpu.memory_space<vmem>>, %arg9: memref<4x1xi32, #tpu.memory_space<vmem>>, %arg10: memref<16x32xf32, #tpu.memory_space<vmem>>, %arg11: memref<1x1x16xi32, #tpu.memory_space<vmem>>) attributes {dimension_semantics = [#tpu.dimension_semantics<parallel>], iteration_bounds = array<i64: 1>, scalar_prefetch = 0 : i64, scratch_operands = 0 : i64, tpu.core_type = #tpu.core_type<tc>, window_params = [{transform_indices = @transform_0, window_bounds = array<i64: 16, 32>}, {pipeline_mode = #tpu.pipeline_mode<synchronous>, transform_indices = @transform_1, window_bounds = array<i64: 4, 32>}, {pipeline_mode = #tpu.pipeline_mode<synchronous>, transform_indices = @transform_2, window_bounds = array<i64: 4, 1>}, {pipeline_mode = #tpu.pipeline_mode<synchronous>, transform_indices = @transform_3, window_bounds = array<i64: 4, 32>}, {pipeline_mode = #tpu.pipeline_mode<synchronous>, transform_indices = @transform_4, window_bounds = array<i64: 1, 32>}, {pipeline_mode = #tpu.pipeline_mode<synchronous>, transform_indices = @transform_5, window_bounds = array<i64: 4, 1>}, {pipeline_mode = #tpu.pipeline_mode<synchronous>, transform_indices = @transform_6, window_bounds = array<i64: 4, 1>}, {pipeline_mode = #tpu.pipeline_mode<synchronous>, transform_indices = @transform_7, window_bounds = array<i64: 4, 1>}, {pipeline_mode = #tpu.pipeline_mode<synchronous>, transform_indices = @transform_8, window_bounds = array<i64: 4, 1>}, {transform_indices = @transform_9, window_bounds = array<i64: 16, 32>}, {transform_indices = @transform_10, window_bounds = array<i64: 1, 1, 16>}]} {
    %c0 = arith.constant 0 : index
    %c0_0 = arith.constant 0 : index
    %0 = vector.load %arg2[%c0, %c0_0] : memref<4x32xf32, #tpu.memory_space<vmem>>, vector<4x32xf32>
    %c0_1 = arith.constant 0 : index
    %c0_2 = arith.constant 0 : index
    %1 = vector.load %arg1[%c0_1, %c0_2] : memref<16x32xf32, #tpu.memory_space<vmem>>, vector<16x32xf32>
    %cst = arith.constant dense<0.000000e+00> : vector<4x16xf32>
    %2 = tpu.matmul %0, %1, %cst {dimension_numbers = #tpu.dot_dimension_numbers<[1], [1], [0], [0], [0, 0, 1, 0], [], []>} : vector<4x32xf32>, vector<16x32xf32>, vector<4x16xf32> -> vector<4x16xf32>
    %c0_3 = arith.constant 0 : index
    %c0_4 = arith.constant 0 : index
    %3 = vector.load %arg3[%c0_3, %c0_4] : memref<4x1xf32, #tpu.memory_space<vmem>>, vector<4x1xf32>
    %4 = vector.broadcast %3 : vector<4x1xf32> to vector<4x16xf32>
    %5 = arith.addf %2, %4 : vector<4x16xf32>
    %6 = math.tanh %5 : vector<4x16xf32>
    %c0_5 = arith.constant 0 : index
    %c0_6 = arith.constant 0 : index
    %7 = vector.load %arg6[%c0_5, %c0_6] : memref<4x1xf32, #tpu.memory_space<vmem>>, vector<4x1xf32>
    %8 = vector.broadcast %7 : vector<4x1xf32> to vector<4x16xf32>
    %9 = arith.mulf %6, %8 : vector<4x16xf32>
    %c0_7 = arith.constant 0 : index
    %c0_8 = arith.constant 0 : index
    %10 = vector.load %arg7[%c0_7, %c0_8] : memref<4x1xf32, #tpu.memory_space<vmem>>, vector<4x1xf32>
    %11 = vector.broadcast %10 : vector<4x1xf32> to vector<4x16xf32>
    %12 = arith.subf %9, %11 : vector<4x16xf32>
    %13 = math.roundeven %12 : vector<4x16xf32>
    %c0_9 = arith.constant 0 : index
    %c0_10 = arith.constant 0 : index
    %14 = vector.load %arg8[%c0_9, %c0_10] : memref<4x1xf32, #tpu.memory_space<vmem>>, vector<4x1xf32>
    %15 = vector.broadcast %14 : vector<4x1xf32> to vector<4x16xf32>
    %16 = arith.divf %13, %15 : vector<4x16xf32>
    %c0_11 = arith.constant 0 : index
    %c0_12 = arith.constant 0 : index
    %17 = vector.load %arg8[%c0_11, %c0_12] : memref<4x1xf32, #tpu.memory_space<vmem>>, vector<4x1xf32>
    %18 = vector.broadcast %17 : vector<4x1xf32> to vector<4x16xf32>
    %19 = arith.addf %13, %18 : vector<4x16xf32>
    %20 = arith.fptosi %19 : vector<4x16xf32> to vector<4x16xi32>
    %c0_13 = arith.constant 0 : index
    %c0_14 = arith.constant 0 : index
    %21 = vector.load %arg9[%c0_13, %c0_14] : memref<4x1xi32, #tpu.memory_space<vmem>>, vector<4x1xi32>
    %22 = vector.broadcast %21 : vector<4x1xi32> to vector<4x16xi32>
    %23 = arith.muli %20, %22 : vector<4x16xi32>
    %24 = vector.extract_strided_slice %23 {offsets = [0, 0], sizes = [1, 16], strides = [1, 1]} : vector<4x16xi32> to vector<1x16xi32>
    %25 = vector.extract_strided_slice %23 {offsets = [1, 0], sizes = [1, 16], strides = [1, 1]} : vector<4x16xi32> to vector<1x16xi32>
    %26 = arith.addi %24, %25 : vector<1x16xi32>
    %27 = vector.extract_strided_slice %23 {offsets = [2, 0], sizes = [1, 16], strides = [1, 1]} : vector<4x16xi32> to vector<1x16xi32>
    %28 = arith.addi %26, %27 : vector<1x16xi32>
    %29 = vector.extract_strided_slice %23 {offsets = [3, 0], sizes = [1, 16], strides = [1, 1]} : vector<4x16xi32> to vector<1x16xi32>
    %30 = arith.addi %28, %29 : vector<1x16xi32>
    %31 = vector.shape_cast %30 : vector<1x16xi32> to vector<1x1x16xi32>
    %c0_15 = arith.constant 0 : index
    %c0_16 = arith.constant 0 : index
    %c0_17 = arith.constant 0 : index
    %32 = vector.load %arg11[%c0_15, %c0_16, %c0_17] : memref<1x1x16xi32, #tpu.memory_space<vmem>>, vector<1x1x16xi32>
    tpu.vector_store %arg11[%c0_15, %c0_16, %c0_17], %31 {strides = array<i32>} : memref<1x1x16xi32, #tpu.memory_space<vmem>>, vector<1x1x16xi32>,
    %c0_18 = arith.constant 0 : index
    %c0_19 = arith.constant 0 : index
    %33 = vector.load %arg4[%c0_18, %c0_19] : memref<4x32xf32, #tpu.memory_space<vmem>>, vector<4x32xf32>
    %cst_20 = arith.constant dense<0.000000e+00> : vector<16x32xf32>
    %34 = tpu.matmul %16, %33, %cst_20 {dimension_numbers = #tpu.dot_dimension_numbers<[0], [0], [1], [1], [0, 1, 1, 1], [], []>} : vector<4x16xf32>, vector<4x32xf32>, vector<16x32xf32> -> vector<16x32xf32>
    %c0_21 = arith.constant 0 : index
    %c0_22 = arith.constant 0 : index
    %35 = vector.load %arg5[%c0_21, %c0_22] : memref<1x32xf32, #tpu.memory_space<vmem>>, vector<1x32xf32>
    %36 = vector.broadcast %35 : vector<1x32xf32> to vector<16x32xf32>
    %37 = arith.addf %34, %36 : vector<16x32xf32>
    %c0_23 = arith.constant 0 : index
    %c0_24 = arith.constant 0 : index
    %38 = vector.load %arg10[%c0_23, %c0_24] : memref<16x32xf32, #tpu.memory_space<vmem>>, vector<16x32xf32>
    tpu.vector_store %arg10[%c0_23, %c0_24], %37 {strides = array<i32>} : memref<16x32xf32, #tpu.memory_space<vmem>>, vector<16x32xf32>,
    return
  }
  func.func @transform_0(%arg0: i32) -> (i32, i32) {
    %c0_i32 = arith.constant 0 : i32
    %c0_i32_0 = arith.constant 0 : i32
    return %arg0, %c0_i32 : i32, i32
  }
  func.func @transform_1(%arg0: i32) -> (i32, i32) {
    %c0_i32 = arith.constant 0 : i32
    %c0_i32_0 = arith.constant 0 : i32
    %c0_i32_1 = arith.constant 0 : i32
    return %c0_i32, %c0_i32_0 : i32, i32
  }
  func.func @transform_2(%arg0: i32) -> (i32, i32) {
    %c0_i32 = arith.constant 0 : i32
    %c0_i32_0 = arith.constant 0 : i32
    %c0_i32_1 = arith.constant 0 : i32
    return %c0_i32, %c0_i32_0 : i32, i32
  }
  func.func @transform_3(%arg0: i32) -> (i32, i32) {
    %c0_i32 = arith.constant 0 : i32
    %c0_i32_0 = arith.constant 0 : i32
    %c0_i32_1 = arith.constant 0 : i32
    return %c0_i32, %c0_i32_0 : i32, i32
  }
  func.func @transform_4(%arg0: i32) -> (i32, i32) {
    %c0_i32 = arith.constant 0 : i32
    %c0_i32_0 = arith.constant 0 : i32
    %c0_i32_1 = arith.constant 0 : i32
    return %c0_i32, %c0_i32_0 : i32, i32
  }
  func.func @transform_5(%arg0: i32) -> (i32, i32) {
    %c0_i32 = arith.constant 0 : i32
    %c0_i32_0 = arith.constant 0 : i32
    %c0_i32_1 = arith.constant 0 : i32
    return %c0_i32, %c0_i32_0 : i32, i32
  }
  func.func @transform_6(%arg0: i32) -> (i32, i32) {
    %c0_i32 = arith.constant 0 : i32
    %c0_i32_0 = arith.constant 0 : i32
    %c0_i32_1 = arith.constant 0 : i32
    return %c0_i32, %c0_i32_0 : i32, i32
  }
  func.func @transform_7(%arg0: i32) -> (i32, i32) {
    %c0_i32 = arith.constant 0 : i32
    %c0_i32_0 = arith.constant 0 : i32
    %c0_i32_1 = arith.constant 0 : i32
    return %c0_i32, %c0_i32_0 : i32, i32
  }
  func.func @transform_8(%arg0: i32) -> (i32, i32) {
    %c0_i32 = arith.constant 0 : i32
    %c0_i32_0 = arith.constant 0 : i32
    %c0_i32_1 = arith.constant 0 : i32
    return %c0_i32, %c0_i32_0 : i32, i32
  }
  func.func @transform_9(%arg0: i32) -> (i32, i32) {
    %c0_i32 = arith.constant 0 : i32
    %c0_i32_0 = arith.constant 0 : i32
    return %arg0, %c0_i32 : i32, i32
  }
  func.func @transform_10(%arg0: i32) -> (i32, i32, i32) {
    %c0_i32 = arith.constant 0 : i32
    %c0_i32_0 = arith.constant 0 : i32
    %c0_i32_1 = arith.constant 0 : i32
    return %arg0, %c0_i32, %c0_i32_0 : i32, i32, i32
  }
}

</mosaic_0001>

<llo_original>
// kernel: tpu_custom_call.1
$region0: #{tpu_custom_call.1}
  #allocation0 [shape = 'u32[]', space=smem, size = 0x4, offset = 0x4, fixed_abs, tag = 'smem constant byte address 0x4 - core index']
  #allocation1 [shape = 'u32[72,128]{1,0:T(1,128)}', space=vmem, size = 0x9000, scoped, tag = 'internal scratch']
  %s0 = inlined_call_operand.hbm [shape: f32[16,32], index: 0, kind: input, shape index: {}]
  %s1 = inlined_call_operand.vmem [shape: f32[4,32], index: 1, kind: input, shape index: {}]
  %s2 = inlined_call_operand.vmem [shape: f32[4,1], index: 2, kind: input, shape index: {}]
  %s3 = inlined_call_operand.vmem [shape: f32[4,32], index: 3, kind: input, shape index: {}]
  %s4 = inlined_call_operand.vmem [shape: f32[1,32], index: 4, kind: input, shape index: {}]
  %s5 = inlined_call_operand.vmem [shape: f32[4,1], index: 5, kind: input, shape index: {}]
  %s6 = inlined_call_operand.vmem [shape: f32[4,1], index: 6, kind: input, shape index: {}]
  %s7 = inlined_call_operand.vmem [shape: f32[4,1], index: 7, kind: input, shape index: {}]
  %s8 = inlined_call_operand.vmem [shape: s32[4,1], index: 8, kind: input, shape index: {}]
  %s9 = inlined_call_operand.hbm [shape: f32[16,32], index: 9, kind: output, shape index: {0}]
  %s10 = inlined_call_operand.hbm [shape: s32[1,1,16], index: 10, kind: output, shape index: {1}]
  %11 = xla_tuple %s9, %s10
  %s12 = sld [smem:[#allocation0]]
  $region58: #{tpu_custom_call.1} parent=0
    _
  %s14 = ssub.s32 1, %s12
  %s15 = scalar_select 0, %s14, %s12
  $region1: #{tpu_custom_call.1} parent=0
    #allocation2 [shape = 'u8[8192]{0}', space=vmem, size = 0x2000, scoped, tag = 'input window, operand 0, single buffered']
    #allocation3 [shape = 's32[1]{0}', space=sflag, size = 0x4, scoped, tag = 'scoped memory for tpu_custom_call.1']
    #allocation4 [shape = 's32[1]{0}', space=sflag, size = 0x4, scoped, tag = 'scoped memory for tpu_custom_call.1']
    #allocation5 [shape = 'u8[8192]{0}', space=vmem, size = 0x2000, scoped, tag = 'output window, operand 0, single buffered']
    #allocation6 [shape = 'u8[512]{0}', space=vmem, size = 0x400, scoped, tag = 'output window, operand 1, single buffered']
    #allocation7 [shape = 's32[1]{0}', space=sflag, size = 0x4, scoped, tag = 'scoped memory for tpu_custom_call.1']
    %16 = vsyncpa [#allocation3], 0
    %17 = vsyncpa [#allocation4], 0
    %18 = vsyncpa [#allocation7], 0
    // Predicated region
    $region2: #{tpu_custom_call.1} parent=1 // pred_check
      _
    $region3: #{tpu_custom_call.1} parent=1 // pred_check_branch
      %20 = sbr.rel (0) target = $region5
    $region4: #{tpu_custom_call.1} parent=1 // pred_region
      %22 = vsyncadd [#allocation3], 0
      %s23 = sshll.u32 %s0, 4
      %s24 = int_to_ptr.hbm [resolvable:$true] %s23
      %s25 = sshll.u32 [#allocation2], 4
      %s26 = int_to_ptr.vmem [resolvable:$true] %s25
      %31 = dma.hbm_to_vmem [thread:$0]  %s24, 256, %s26, [#allocation3], 128, 128, 8
    $region5: #{tpu_custom_call.1} parent=1 // pred_fallthru
      _
    // Predicated region
    $region6: #{tpu_custom_call.1} parent=1 // pred_check
      _
    $region7: #{tpu_custom_call.1} parent=1 // pred_check_branch
      %33 = sbr.rel (0) target = $region9
    $region8: #{tpu_custom_call.1} parent=1 // pred_region
      _
    $region9: #{tpu_custom_call.1} parent=1 // pred_fallthru
      _
    // Predicated region
    $region10: #{tpu_custom_call.1} parent=1 // pred_check
      _
    $region11: #{tpu_custom_call.1} parent=1 // pred_check_branch
      %35 = sbr.rel (0) target = $region13
    $region12: #{tpu_custom_call.1} parent=1 // pred_region
      _
    $region13: #{tpu_custom_call.1} parent=1 // pred_fallthru
      _
    // Predicated region
    $region14: #{tpu_custom_call.1} parent=1 // pred_check
      _
    $region15: #{tpu_custom_call.1} parent=1 // pred_check_branch
      %37 = sbr.rel (0) target = $region17
    $region16: #{tpu_custom_call.1} parent=1 // pred_region
      _
    $region17: #{tpu_custom_call.1} parent=1 // pred_fallthru
      _
    // Predicated region
    $region18: #{tpu_custom_call.1} parent=1 // pred_check
      _
    $region19: #{tpu_custom_call.1} parent=1 // pred_check_branch
      %39 = sbr.rel (0) target = $region21
    $region20: #{tpu_custom_call.1} parent=1 // pred_region
      _
    $region21: #{tpu_custom_call.1} parent=1 // pred_fallthru
      _
    // Predicated region
    $region22: #{tpu_custom_call.1} parent=1 // pred_check
      _
    $region23: #{tpu_custom_call.1} parent=1 // pred_check_branch
      %41 = sbr.rel (0) target = $region25
    $region24: #{tpu_custom_call.1} parent=1 // pred_region
      _
    $region25: #{tpu_custom_call.1} parent=1 // pred_fallthru
      _
    // Predicated region
    $region26: #{tpu_custom_call.1} parent=1 // pred_check
      _
    $region27: #{tpu_custom_call.1} parent=1 // pred_check_branch
      %43 = sbr.rel (0) target = $region29
    $region28: #{tpu_custom_call.1} parent=1 // pred_region
      _
    $region29: #{tpu_custom_call.1} parent=1 // pred_fallthru
      _
    // Predicated region
    $region30: #{tpu_custom_call.1} parent=1 // pred_check
      _
    $region31: #{tpu_custom_call.1} parent=1 // pred_check_branch
      %45 = sbr.rel (0) target = $region33
    $region32: #{tpu_custom_call.1} parent=1 // pred_region
      _
    $region33: #{tpu_custom_call.1} parent=1 // pred_fallthru
      _
    // Predicated region
    $region34: #{tpu_custom_call.1} parent=1 // pred_check
      _
    $region35: #{tpu_custom_call.1} parent=1 // pred_check_branch
      %47 = sbr.rel (0) target = $region37
    $region36: #{tpu_custom_call.1} parent=1 // pred_region
      _
    $region37: #{tpu_custom_call.1} parent=1 // pred_fallthru
      _
    // Predicated region
    $region38: #{tpu_custom_call.1} parent=1 // pred_check
      _
    $region39: #{tpu_custom_call.1} parent=1 // pred_check_branch
      %49 = sbr.rel (0) target = $region41
    $region40: #{tpu_custom_call.1} parent=1 // pred_region
      %51 = dma.done [#allocation3], 256
    $region41: #{tpu_custom_call.1} parent=1 // pred_fallthru
      _
    %v52 = vld [vmem:[%s1] sm:$0xf]
    %v53 = vld [vmem:[#allocation2] sm:$0xff]
    %v54 = vld [vmem:[#allocation2 + $0x8] sm:$0xff]
    %v55 = vld [vmem:[%s2] sm:$0xf]
    %57 = vset.pattern.permute.xlu0 0
    %58 = vperm.xlu0 %57, %v55
    %v59 = vpop.permute.xlu0 %58
    %vm61 = vcmask 261120
    %v63 = vsel %vm61, %v52, 0
    %v66 = vsel %vm61, %v53, 0
    %v69 = vsel %vm61, %v54, 0
    %71 = vmatpush.xpose.msra.mxu0 0.0
    %72 = vmatpush.xpose.msra.mxu0 0.0
    %73 = vmatpush.xpose.msra.mxu0 0.0
    %74 = vmatpush.xpose.msra.mxu0 0.0
    %75 = vmatpush.xpose.msra.mxu0 0.0
    %76 = vmatpush.xpose.msra.mxu0 0.0
    %77 = vmatpush.xpose.msra.mxu0 0.0
    %78 = vmatpush.xpose.msra.mxu0 0.0
    %79 = vmatpush.xpose.msra.mxu0 0.0
    %80 = vmatpush.xpose.msra.mxu0 0.0
    %81 = vmatpush.xpose.msra.mxu0 0.0
    %82 = vmatpush.xpose.msra.mxu0 0.0
    %83 = vmatpush.xpose.msra.mxu0 0.0
    %84 = vmatpush.xpose.msra.mxu0 0.0
    %85 = vmatpush.xpose.msra.mxu0 %v69
    %86 = vmatpush.xpose.msra.mxu0 %v66
    %87 = vmatmul.f32.gmra.mxu0 %v63
    %v88 = vpop.f32.mrf.mxu0
    %v89 = vadd.f32 %v59, %v88
    %90 = vdwg.mxu0
    %v91 = vtanh.pop %v89
    %v92 = vld [vmem:[%s5] sm:$0xf]
    %94 = vset.pattern.permute.xlu0 0
    %95 = vperm.xlu0 %94, %v92
    %v96 = vpop.permute.xlu0 %95
    %v98 = vmul.f32 %v91, %v96
    %v99 = vld [vmem:[%s6] sm:$0xf]
    %101 = vset.pattern.permute.xlu0 0
    %102 = vperm.xlu0 %101, %v99
    %v103 = vpop.permute.xlu0 %102
    %v105 = vsub.f32 %v98, %v103
    %v106 = vround.ne.pseudo %v105
    %v107 = vld [vmem:[%s7] sm:$0xf]
    %109 = vset.pattern.permute.xlu0 0
    %110 = vperm.xlu0 %109, %v107
    %v111 = vpop.permute.xlu0 %110
    %v113 = vrcp.pop %v111
    %v114 = vmul.f32 %v111, %v113
    %v115 = vsub.f32 1.0, %v114
    %v116 = vmul.f32 %v113, %v115
    %v117 = vadd.f32 %v113, %v116
    %vm118 = vweird.f32 %v111
    %vm119 = vweird.f32 %v113
    %vm120 = vmor %vm118, %vm119
    %v121 = vsel %vm120, %v113, %v117
    %v122 = vand.u32 2147483647, %v111
    %vm123 = vcmp.eq.f32.partialorder %v122, 8.507059e+37
    %v124 = vand.u32 %v111, 2147483648
    %v125 = vor.u32 1.1754944e-38, %v124
    %v126 = vsel %vm123, %v125, %v121
    %v127 = vmul.f32 %v106, %v126
    %v128 = vadd.f32 %v106, %v111
    %v129 = vcvt.f32.s32.to.zero.pseudo %v128
    %v130 = vld [vmem:[%s8] sm:$0xf]
    %131 = vset.pattern.permute.xlu0 0
    %132 = vperm.xlu0 %131, %v130
    %v133 = vpop.permute.xlu0 %132
    %v134 = vmul.u32 %v129, %v133
    %v135 = vrot.slane %v134, 1
    %v136 = vadd.s32 %v134, %v135
    %v137 = vrot.slane %v134, 2
    %v138 = vadd.s32 %v136, %v137
    %v139 = vrot.slane %v134, 3
    %v140 = vadd.s32 %v138, %v139
    %vm141 = vcmask 122880
    %142 = vst.msk [vmem:[#allocation6] sm:$0x1] %vm141, %v140
    %v143 = vld [vmem:[%s3] sm:$0xf]
    %v144 = vld [vmem:[%s4] sm:$0x1]
    %v146 = vperm.slane %v144, 0
    %148 = vxpose.xlu0.b32.start [1/16] %v127, 128
    %149 = vxpose.xlu0.b32.cont [2/16] 0.0, 128
    %150 = vxpose.xlu0.b32.cont [3/16] 0.0, 128
    %151 = vxpose.xlu0.b32.cont [4/16] 0.0, 128
    %152 = vxpose.xlu0.b32.cont [5/16] 0.0, 128
    %153 = vxpose.xlu0.b32.cont [6/16] 0.0, 128
    %154 = vxpose.xlu0.b32.cont [7/16] 0.0, 128
    %155 = vxpose.xlu0.b32.cont [8/16] 0.0, 128
    %156 = vxpose.xlu0.b32.cont [9/16] 0.0, 128
    %157 = vxpose.xlu0.b32.cont [10/16] 0.0, 128
    %158 = vxpose.xlu0.b32.cont [11/16] 0.0, 128
    %159 = vxpose.xlu0.b32.cont [12/16] 0.0, 128
    %160 = vxpose.xlu0.b32.cont [13/16] 0.0, 128
    %161 = vxpose.xlu0.b32.cont [14/16] 0.0, 128
    %162 = vxpose.xlu0.b32.cont [15/16] 0.0, 128
    %163 = vxpose.xlu0.b32.end [16/16] 0.0, 128
    %v164 = vpop.trf.xlu0
    %v165 = vpop.trf.xlu0
    %v166 = vpop.trf.xlu0
    %v167 = vpop.trf.xlu0
    %v168 = vpop.trf.xlu0
    %v169 = vpop.trf.xlu0
    %v170 = vpop.trf.xlu0
    %v171 = vpop.trf.xlu0
    %v172 = vpop.trf.xlu0
    %v173 = vpop.trf.xlu0
    %v174 = vpop.trf.xlu0
    %v175 = vpop.trf.xlu0
    %v176 = vpop.trf.xlu0
    %v177 = vpop.trf.xlu0
    %v178 = vpop.trf.xlu0
    %v179 = vpop.trf.xlu0
    %vm180 = vcmask 31744
    %v182 = vsel %vm180, %v164, 0
    %v185 = vsel %vm180, %v165, 0
    %vm187 = vcmask 1043456
    %v189 = vsel %vm187, %v143, 0
    %191 = vmatpush.msra.mxu0 0.0
    %192 = vmatpush.msra.mxu0 0.0
    %193 = vmatpush.msra.mxu0 0.0
    %194 = vmatpush.msra.mxu0 0.0
    %195 = vmatpush.msra.mxu0 0.0
    %196 = vmatpush.msra.mxu0 0.0
    %197 = vmatpush.msra.mxu0 0.0
    %198 = vmatpush.msra.mxu0 0.0
    %199 = vmatpush.msra.mxu0 0.0
    %200 = vmatpush.msra.mxu0 0.0
    %201 = vmatpush.msra.mxu0 0.0
    %202 = vmatpush.msra.mxu0 0.0
    %203 = vmatpush.msra.mxu0 0.0
    %204 = vmatpush.msra.mxu0 0.0
    %205 = vmatpush.msra.mxu0 0.0
    %206 = vmatpush.msra.mxu0 %v189
    %207 = vmatmul.f32.gmra.mxu0 %v182
    %v208 = vpop.f32.mrf.mxu0
    %v209 = vadd.f32 %v146, %v208
    %210 = vmatmul.f32.gmra.mxu0 %v185
    %v211 = vpop.f32.mrf.mxu0
    %v212 = vadd.f32 %v146, %v211
    %213 = vdwg.mxu0
    %214 = vst.msk [vmem:[#allocation5] sm:$0xff] %vm61, %v209
    %215 = vst.msk [vmem:[#allocation5 + $0x8] sm:$0xff] %vm61, %v212
    // Predicated region
    $region42: #{tpu_custom_call.1} parent=1 // pred_check
      _
    $region43: #{tpu_custom_call.1} parent=1 // pred_check_branch
      %217 = sbr.rel (0) target = $region45
    $region44: #{tpu_custom_call.1} parent=1 // pred_region
      %219 = vsyncadd [#allocation4], 0
      %s220 = sshll.u32 [#allocation5], 4
      %s221 = int_to_ptr.vmem [resolvable:$true] %s220
      %s222 = sshll.u32 %s9, 4
      %s223 = int_to_ptr.hbm [resolvable:$true] %s222
      %228 = dma.vmem_to_hbm [thread:$0]  %s221, 256, %s223, [#allocation4], 128, 128, 8
    $region45: #{tpu_custom_call.1} parent=1 // pred_fallthru
      _
    // Predicated region
    $region46: #{tpu_custom_call.1} parent=1 // pred_check
      _
    $region47: #{tpu_custom_call.1} parent=1 // pred_check_branch
      %230 = sbr.rel (0) target = $region49
    $region48: #{tpu_custom_call.1} parent=1 // pred_region
      %232 = vsyncadd [#allocation7], 0
      %s234 = sshll.u32 [#allocation6], 4
      %s235 = int_to_ptr.vmem [resolvable:$true] %s234
      %s236 = sshll.u32 %s10, 4
      %s237 = int_to_ptr.hbm [resolvable:$true] %s236
      %239 = dma.vmem_to_hbm [thread:$0]  %s235, 16, %s237, [#allocation7]
    $region49: #{tpu_custom_call.1} parent=1 // pred_fallthru
      _
    // Predicated region
    $region50: #{tpu_custom_call.1} parent=1 // pred_check
      _
    $region51: #{tpu_custom_call.1} parent=1 // pred_check_branch
      %241 = sbr.rel (0) target = $region53
    $region52: #{tpu_custom_call.1} parent=1 // pred_region
      %243 = dma.done [#allocation4], 256
    $region53: #{tpu_custom_call.1} parent=1 // pred_fallthru
      _
    // Predicated region
    $region54: #{tpu_custom_call.1} parent=1 // pred_check
      _
    $region55: #{tpu_custom_call.1} parent=1 // pred_check_branch
      %245 = sbr.rel (0) target = $region57
    $region56: #{tpu_custom_call.1} parent=1 // pred_region
      %247 = dma.done [#allocation7], 16
    $region57: #{tpu_custom_call.1} parent=1 // pred_fallthru
      _
    %248 = vsyncpa [#allocation3], 1
    %249 = vsyncpa [#allocation4], 1
    %250 = vsyncpa [#allocation7], 1

</llo_original>
